<compile_context>
chip_gen: v6e
topology: v6e:2x2x1
jax: 0.10.0
libtpu: 0.0.40
codegen_flags: <defaults>
</compile_context>

<pallas_src>
import functools

import jax
import jax.numpy as jnp
from jax.experimental import pallas as pl
from jax.experimental.pallas import tpu as pltpu


def _erf(x):
    # Abramowitz & Stegun 7.1.26 polynomial, max abs error ~1.5e-7 (fp32).
    a1, a2, a3, a4, a5 = 0.254829592, -0.284496736, 1.421413741, -1.453152027, 1.061405429
    p = 0.3275911
    sign = jnp.where(x >= 0.0, 1.0, -1.0)
    ax = jnp.abs(x)
    # approx reciprocal runs on the EUP (otherwise idle during the MLP), off the VALU.
    t = pl.reciprocal(1.0 + p * ax, approx=True)
    poly = ((((a5 * t + a4) * t + a3) * t + a2) * t + a1) * t
    return sign * (1.0 - poly * jnp.exp(-ax * ax))


def _gelu_exact(x):
    # matches torch.nn.functional.gelu (default, erf-based)
    return 0.5 * x * (1.0 + _erf(x * 0.7071067811865476))


def _layernorm(x, g, b, eps=1e-5):
    mu = jnp.mean(x, axis=-1, keepdims=True)
    xc = x - mu
    var = jnp.mean(xc * xc, axis=-1, keepdims=True)
    return xc * jax.lax.rsqrt(var + eps) * g + b


# ---------------------------------------------------------------------------
# Pass 1: LayerNorm1 + fused (Q-scaled) QKV projection.
# ---------------------------------------------------------------------------
def qkv_proj_kernel(x_ref, ln1_g, ln1_b, wqkv, bqkv, qkv_ref):
    xt = x_ref[0].astype(jnp.float32)                                    # (TS, E)
    h = _layernorm(xt, ln1_g[...], ln1_b[...]).astype(jnp.bfloat16)
    qkv = jnp.dot(h, wqkv[...], preferred_element_type=jnp.float32) + bqkv[...]
    qkv_ref[0] = qkv.astype(qkv_ref.dtype)                               # (TS, 3E) bf16


# ---------------------------------------------------------------------------
# Pass 2: flash attention (online softmax over KV tiles) + out-projection +
#         residual + LayerNorm2 + exact-GELU MLP + residual, per (batch, q tile).
# ---------------------------------------------------------------------------
def flash_attn_mlp_kernel(
        x_ref, q_ref, k_ref, v_ref,
        wo, bo, ln2_g, ln2_b, w1, b1, w2, b2,
        o_ref,
        m_scr, l_scr, acc_scr,
        *, num_head):
    f32, bf16 = jnp.float32, jnp.bfloat16
    H = num_head
    TQ, D = q_ref.shape[2], q_ref.shape[3]
    E = x_ref.shape[2]
    ki = pl.program_id(2)

    @pl.when(ki == 0)
    def _():
        m_scr[...] = jnp.full(m_scr.shape, -jnp.inf, dtype=m_scr.dtype)
        l_scr[...] = jnp.zeros(l_scr.shape, dtype=l_scr.dtype)
        acc_scr[...] = jnp.zeros(acc_scr.shape, dtype=acc_scr.dtype)

    # ---- online-softmax update for this (q tile, kv tile) pair ----
    s = jnp.einsum('hqd,hkd->hqk', q_ref[0], k_ref[0],
                   preferred_element_type=f32)                           # (H, TQ, TKV)
    m_prev = m_scr[...]
    m_new = jnp.maximum(m_prev, jnp.max(s, axis=-1, keepdims=True))      # (H, TQ, 1)
    alpha = jnp.exp(m_prev - m_new)
    p = jnp.exp(s - m_new)
    l_scr[...] = alpha * l_scr[...] + jnp.sum(p, axis=-1, keepdims=True)
    acc_scr[...] = alpha * acc_scr[...] + jnp.einsum(
        'hqk,hkd->hqd', p.astype(bf16), v_ref[0], preferred_element_type=f32)
    m_scr[...] = m_new

    # ---- finalize this q tile: normalize AFTER PV, out-proj, residual, MLP ----
    @pl.when(ki == pl.num_programs(2) - 1)
    def _():
        inv_l = pl.reciprocal(l_scr[...], approx=True)                   # (H, TQ, 1)
        # Head merge + out-projection as H standard MXU matmuls on static weight slices:
        #   concat_h(ctx_h) @ wo == sum_h ctx_h @ wo[h*D:(h+1)*D, :]
        # (avoids per-head masked-store merge loops / cross-layout transposes in-kernel).
        attn = jnp.zeros((TQ, E), f32)
        for h in range(H):
            ctx_h = (acc_scr[h] * inv_l[h]).astype(bf16)                 # (TQ, D)
            attn = attn + jnp.dot(ctx_h, wo[h * D:(h + 1) * D, :],
                                  preferred_element_type=f32)
        xt = x_ref[0].astype(f32)
        x1 = xt + attn + bo[...]                        # dropout(p=0.0) == identity

        h2 = _layernorm(x1, ln2_g[...], ln2_b[...]).astype(bf16)
        ff = jnp.dot(h2, w1[...], preferred_element_type=f32) + b1[...]
        ff = _gelu_exact(ff)
        ff = jnp.dot(ff.astype(bf16), w2[...], preferred_element_type=f32) + b2[...]
        o_ref[0] = (x1 + ff).astype(o_ref.dtype)


# ---------------------------------------------------------------------------
# VMEM-aware tiling.
# ---------------------------------------------------------------------------
def _vmem_budget_bytes():
    try:
        return int(pltpu.get_tpu_info().vmem_capacity_bytes) * 3 // 4
    except Exception:
        return 64 * 1024 * 1024


def _tile_candidates(T):
    cands = [c for c in (512, 256, 128, 64, 32, 16, 8) if c <= T and T % c == 0]
    # TODO(synk): odd T falls back to one full-sequence tile; pad T upstream to a multiple
    #             of 8 to keep the (H, TQ, TKV) score block bounded for long sequences.
    return cands or [T]


def _pick_attn_tiles(T, E, H, budget):
    D = E // H
    cands = _tile_candidates(T)
    resident_weights = 2 * 9 * E * E + 4 * 8 * E           # bf16 wo/w1/w2 + f32 bias/LN vecs
    avail = int(budget * 0.8) - resident_weights

    def footprint(tq, tkv):
        fp = 2 * 2 * H * tkv * D * 2                       # K and V tiles (bf16, 2-buffered)
        fp += 2 * H * tq * D * 2                           # Q tile (bf16, 2-buffered)
        fp += 2 * tq * E * 4 + 2 * tq * E * 4              # x tile + out tile (2-buffered)
        fp += H * tq * tkv * (4 + 4 + 2)                   # scores f32 + exp f32 + p bf16
        fp += H * tq * (D + 2) * 4                         # acc / m / l scratch (f32)
        fp += tq * 4 * E * (4 + 2)                         # MLP hidden (f32 + bf16 copy)
        fp += 4 * tq * E * 4                               # LN / residual / attn temporaries
        return fp

    pairs = sorted(((tq, tkv) for tq in cands for tkv in cands),
                   key=lambda pr: (min(pr), pr[0] + pr[1], pr[0]), reverse=True)
    for tq, tkv in pairs:
        if footprint(tq, tkv) <= avail:
            return tq, tkv
    return cands[-1], cands[-1]


def _pick_proj_tile(T, E, budget):
    cands = _tile_candidates(T)
    fixed = 2 * 3 * E * E + 4 * 5 * E                      # wqkv (bf16) + bqkv/ln1 (f32)
    per_row = E * (2 * 4 + 2 * 2 * 3 + 4 * 3 + 4 * 2)      # x / qkv-out (2-buffered) + temps
    avail = int(budget * 0.8) - fixed
    for ts in cands:
        if ts * per_row <= avail:
            return ts
    return cands[-1]


# ---------------------------------------------------------------------------
# Wrapper.
# ---------------------------------------------------------------------------
def transformer_layer(x, params, num_head):
    """Forward pass of TransformerLayer (attn_mask=None, dropout == identity)."""
    B, T, E = x.shape
    assert E % num_head == 0
    H = num_head
    D = E // H
    f32, bf16 = jnp.float32, jnp.bfloat16
    budget = _vmem_budget_bytes()

    # qkv_proj columns are ordered (k=3, h, d): [0:E]=Q, [E:2E]=K, [2E:3E]=V.
    # Fold 1/sqrt(head_dim) into the Q columns so the kernel never rescales scores.
    scale = 1.0 / (D ** 0.5)
    col_scale = jnp.concatenate(
        [jnp.full((E,), scale, f32), jnp.ones((2 * E,), f32)])[None, :]
    wqkv = (params['wqkv'].astype(f32) * col_scale).astype(bf16)
    bqkv = params['bqkv'].astype(f32).reshape(1, 3 * E) * col_scale

    proj_weights = [
        params['ln1_g'].reshape(1, E).astype(f32),
        params['ln1_b'].reshape(1, E).astype(f32),
        wqkv, bqkv,
    ]
    main_weights = [
        params['wo'].astype(bf16), params['bo'].reshape(1, E).astype(f32),
        params['ln2_g'].reshape(1, E).astype(f32), params['ln2_b'].reshape(1, E).astype(f32),
        params['w1'].astype(bf16), params['b1'].reshape(1, 4 * E).astype(f32),
        params['w2'].astype(bf16), params['b2'].reshape(1, E).astype(f32),
    ]

    TS = _pick_proj_tile(T, E, budget)
    TQ, TKV = _pick_attn_tiles(T, E, H, budget)
    NT, NQ, NKV = T // TS, T // TQ, T // TKV

    def run(single_buffer_weights):
        def const_spec(shape, rank):
            zeros = (0,) * len(shape)
            imap = (lambda b, t: zeros) if rank == 2 else (lambda b, qi, ki: zeros)
            if single_buffer_weights:
                # Constant-index weights never change across the grid: one VMEM buffer.
                return pl.BlockSpec(shape, imap, pipeline_mode=pl.Buffered(buffer_count=1))
            return pl.BlockSpec(shape, imap)

        # ---- pass 1: LN1 + fused (scaled) QKV projection ----
        qkv = pl.pallas_call(
            qkv_proj_kernel,
            out_shape=jax.ShapeDtypeStruct((B, T, 3 * E), bf16),
            grid=(B, NT),
            in_specs=[pl.BlockSpec((1, TS, E), lambda b, t: (b, t, 0))]
                     + [const_spec(w.shape, 2) for w in proj_weights],
            out_specs=pl.BlockSpec((1, TS, 3 * E), lambda b, t: (b, t, 0)),
            compiler_params=pltpu.CompilerParams(
                dimension_semantics=("parallel", "parallel"),
                vmem_limit_bytes=budget),
        )(x, *proj_weights)

        # ---- head split 'b t (k h d) -> k b h t d': XLA layout plumbing between calls ----
        qkv5 = qkv.reshape(B, T, 3, H, D)
        q = jnp.transpose(qkv5[:, :, 0], (0, 2, 1, 3))    # (B, H, T, D) bf16
        k = jnp.transpose(qkv5[:, :, 1], (0, 2, 1, 3))
        v = jnp.transpose(qkv5[:, :, 2], (0, 2, 1, 3))

        # ---- pass 2: flash attention + out-proj + residual + LN2 + MLP + residual ----
        kernel = functools.partial(flash_attn_mlp_kernel, num_head=H)
        out = pl.pallas_call(
            kernel,
            out_shape=jax.ShapeDtypeStruct((B, T, E), x.dtype),
            grid=(B, NQ, NKV),
            in_specs=[pl.BlockSpec((1, TQ, E), lambda b, qi, ki: (b, qi, 0)),
                      pl.BlockSpec((1, H, TQ, D), lambda b, qi, ki: (b, 0, qi, 0)),
                      pl.BlockSpec((1, H, TKV, D), lambda b, qi, ki: (b, 0, ki, 0)),
                      pl.BlockSpec((1, H, TKV, D), lambda b, qi, ki: (b, 0, ki, 0))]
                     + [const_spec(w.shape, 3) for w in main_weights],
            out_specs=pl.BlockSpec((1, TQ, E), lambda b, qi, ki: (b, qi, 0)),
            scratch_shapes=[pltpu.VMEM((H, TQ, 1), f32),    # running max
                            pltpu.VMEM((H, TQ, 1), f32),    # running sum
                            pltpu.VMEM((H, TQ, D), f32)],   # unnormalized PV accumulator
            compiler_params=pltpu.CompilerParams(
                dimension_semantics=("parallel", "parallel", "arbitrary"),
                vmem_limit_bytes=budget),
        )(x, q, k, v, *main_weights)
        return jax.block_until_ready(out)

    try:
        return run(single_buffer_weights=True)
    except Exception:
        # This Pallas build rejected pipeline_mode=pl.Buffered(1); fall back to the default
        # double-buffered weight specs (identical numerics, just more resident VMEM).
        return run(single_buffer_weights=False)


def transformer_layer_ref(x, p, num_head):
    # pure-JAX fp32 reference (same math as the PyTorch module) for a sanity check
    def ln(v, g, b):
        mu = jnp.mean(v, -1, keepdims=True)
        var = jnp.mean((v - mu) ** 2, -1, keepdims=True)
        return (v - mu) * jax.lax.rsqrt(var + 1e-5) * g + b

    B, T, E = x.shape
    D = E // num_head
    h = ln(x, p['ln1_g'], p['ln1_b'])
    qkv = h @ p['wqkv'] + p['bqkv']
    qkv = qkv.reshape(B, T, 3, num_head, D)
    q, k, v = qkv[:, :, 0], qkv[:, :, 1], qkv[:, :, 2]        # (B, T, H, D)
    s = jnp.einsum('bthd,bshd->bhts', q, k) / (D ** 0.5)
    pattn = jax.nn.softmax(s, axis=-1)
    av = jnp.einsum('bhts,bshd->bthd', pattn, v).reshape(B, T, E)
    x1 = x + (av @ p['wo'] + p['bo'])
    h2 = ln(x1, p['ln2_g'], p['ln2_b'])
    ff = jax.nn.gelu(h2 @ p['w1'] + p['b1'], approximate=False) @ p['w2'] + p['b2']
    return x1 + ff


if __name__ == "__main__":
    B, T, E, H = 2, 8, 32, 4
    key = jax.random.PRNGKey(0)
    ks = jax.random.split(key, 8)
    x = jax.random.normal(ks[0], (B, T, E), jnp.float32)

    params = {
        'ln1_g': jnp.ones((1, E), jnp.float32),
        'ln1_b': jnp.zeros((1, E), jnp.float32),
        'wqkv': 0.02 * jax.random.normal(ks[1], (E, 3 * E), jnp.float32),
        'bqkv': 0.02 * jax.random.normal(ks[2], (1, 3 * E), jnp.float32),
        'wo':   0.02 * jax.random.normal(ks[3], (E, E), jnp.float32),
        'bo':   jnp.zeros((1, E), jnp.float32),
        'ln2_g': jnp.ones((1, E), jnp.float32),
        'ln2_b': jnp.zeros((1, E), jnp.float32),
        'w1':   0.02 * jax.random.normal(ks[4], (E, 4 * E), jnp.float32),
        'b1':   0.02 * jax.random.normal(ks[5], (1, 4 * E), jnp.float32),
        'w2':   0.02 * jax.random.normal(ks[6], (4 * E, E), jnp.float32),
        'b2':   jnp.zeros((1, E), jnp.float32),
    }

    out = transformer_layer(x, params, H)
    out = jax.block_until_ready(out)

    ref = transformer_layer_ref(x, params, H)
    assert out.shape == (B, T, E)
    # bf16 matmul operands (f32 accumulation) + approx reciprocals => ~1e-3-level diffs
    assert jnp.max(jnp.abs(out - ref)) < 5e-3, "mismatch vs JAX fp32 reference"

    print("KERNEL_OK")
</pallas_src>

<mosaic_0001>
module attributes {stable_mosaic.version = 11 : i64} {
  func.func @qkv_proj_kernel(%arg0: i32, %arg1: i32, %arg2: memref<1x8x32xf32, #tpu.memory_space<vmem>>, %arg3: memref<1x32xf32, #tpu.memory_space<vmem>>, %arg4: memref<1x32xf32, #tpu.memory_space<vmem>>, %arg5: memref<32x96xbf16, #tpu.memory_space<vmem>>, %arg6: memref<1x96xf32, #tpu.memory_space<vmem>>, %arg7: memref<1x8x96xbf16, #tpu.memory_space<vmem>>) attributes {dimension_semantics = [#tpu.dimension_semantics<parallel>, #tpu.dimension_semantics<parallel>], iteration_bounds = array<i64: 2, 1>, scalar_prefetch = 0 : i64, scratch_operands = 0 : i64, tpu.core_type = #tpu.core_type<tc>, window_params = [{transform_indices = @transform_0, window_bounds = array<i64: 1, 8, 32>}, {pipeline_mode = #tpu.pipeline_mode<synchronous>, transform_indices = @transform_1, window_bounds = array<i64: 1, 32>}, {pipeline_mode = #tpu.pipeline_mode<synchronous>, transform_indices = @transform_2, window_bounds = array<i64: 1, 32>}, {pipeline_mode = #tpu.pipeline_mode<synchronous>, transform_indices = @transform_3, window_bounds = array<i64: 32, 96>}, {pipeline_mode = #tpu.pipeline_mode<synchronous>, transform_indices = @transform_4, window_bounds = array<i64: 1, 96>}, {transform_indices = @transform_5, window_bounds = array<i64: 1, 8, 96>}]} {
    %c0 = arith.constant 0 : index
    %c0_0 = arith.constant 0 : index
    %c0_1 = arith.constant 0 : index
    %0 = vector.load %arg2[%c0, %c0_0, %c0_1] : memref<1x8x32xf32, #tpu.memory_space<vmem>>, vector<1x8x32xf32>
    %1 = vector.shape_cast %0 : vector<1x8x32xf32> to vector<8x32xf32>
    %c0_2 = arith.constant 0 : index
    %c0_3 = arith.constant 0 : index
    %2 = vector.load %arg3[%c0_2, %c0_3] : memref<1x32xf32, #tpu.memory_space<vmem>>, vector<1x32xf32>
    %c0_4 = arith.constant 0 : index
    %c0_5 = arith.constant 0 : index
    %3 = vector.load %arg4[%c0_4, %c0_5] : memref<1x32xf32, #tpu.memory_space<vmem>>, vector<1x32xf32>
    %cst = arith.constant dense<0.000000e+00> : vector<8xf32>
    %4 = vector.multi_reduction <add>, %1, %cst [1] : vector<8x32xf32> to vector<8xf32>
    %5 = vector.shape_cast %4 : vector<8xf32> to vector<8x1xf32>
    %cst_6 = arith.constant 3.200000e+01 : f32
    %6 = vector.broadcast %cst_6 : f32 to vector<8x1xf32>
    %7 = arith.divf %5, %6 : vector<8x1xf32>
    %8 = vector.broadcast %7 : vector<8x1xf32> to vector<8x32xf32>
    %9 = arith.subf %1, %8 : vector<8x32xf32>
    %10 = arith.mulf %9, %9 : vector<8x32xf32>
    %cst_7 = arith.constant dense<0.000000e+00> : vector<8xf32>
    %11 = vector.multi_reduction <add>, %10, %cst_7 [1] : vector<8x32xf32> to vector<8xf32>
    %12 = vector.shape_cast %11 : vector<8xf32> to vector<8x1xf32>
    %cst_8 = arith.constant 3.200000e+01 : f32
    %13 = vector.broadcast %cst_8 : f32 to vector<8x1xf32>
    %14 = arith.divf %12, %13 : vector<8x1xf32>
    %cst_9 = arith.constant 9.99999974E-6 : f32
    %15 = vector.broadcast %cst_9 : f32 to vector<8x1xf32>
    %16 = arith.addf %14, %15 : vector<8x1xf32>
    %17 = math.rsqrt %16 : vector<8x1xf32>
    %18 = vector.broadcast %17 : vector<8x1xf32> to vector<8x32xf32>
    %19 = arith.mulf %9, %18 : vector<8x32xf32>
    %20 = vector.broadcast %2 : vector<1x32xf32> to vector<8x32xf32>
    %21 = arith.mulf %19, %20 : vector<8x32xf32>
    %22 = vector.broadcast %3 : vector<1x32xf32> to vector<8x32xf32>
    %23 = arith.addf %21, %22 : vector<8x32xf32>
    %24 = arith.truncf %23 : vector<8x32xf32> to vector<8x32xbf16>
    %c0_10 = arith.constant 0 : index
    %c0_11 = arith.constant 0 : index
    %25 = vector.load %arg5[%c0_10, %c0_11] : memref<32x96xbf16, #tpu.memory_space<vmem>>, vector<32x96xbf16>
    %cst_12 = arith.constant dense<0.000000e+00> : vector<8x96xf32>
    %26 = tpu.matmul %24, %25, %cst_12 {dimension_numbers = #tpu.dot_dimension_numbers<[1], [0], [0], [1], [0, 0, 1, 1], [], []>} : vector<8x32xbf16>, vector<32x96xbf16>, vector<8x96xf32> -> vector<8x96xf32>
    %c0_13 = arith.constant 0 : index
    %c0_14 = arith.constant 0 : index
    %27 = vector.load %arg6[%c0_13, %c0_14] : memref<1x96xf32, #tpu.memory_space<vmem>>, vector<1x96xf32>
    %28 = vector.broadcast %27 : vector<1x96xf32> to vector<8x96xf32>
    %29 = arith.addf %26, %28 : vector<8x96xf32>
    %30 = arith.truncf %29 : vector<8x96xf32> to vector<8x96xbf16>
    %c0_15 = arith.constant 0 : index
    %c0_16 = arith.constant 0 : index
    %c0_17 = arith.constant 0 : index
    %31 = vector.load %arg7[%c0_15, %c0_16, %c0_17] : memref<1x8x96xbf16, #tpu.memory_space<vmem>>, vector<1x8x96xbf16>
    %32 = vector.shape_cast %31 : vector<1x8x96xbf16> to vector<8x96xbf16>
    %33 = vector.shape_cast %30 : vector<8x96xbf16> to vector<1x8x96xbf16>
    tpu.vector_store %arg7[%c0_15, %c0_16, %c0_17], %33 {strides = array<i32>} : memref<1x8x96xbf16, #tpu.memory_space<vmem>>, vector<1x8x96xbf16>,
    return
  }
  func.func @transform_0(%arg0: i32, %arg1: i32) -> (i32, i32, i32) {
    %c0_i32 = arith.constant 0 : i32
    %c0_i32_0 = arith.constant 0 : i32
    return %arg0, %arg1, %c0_i32 : i32, i32, i32
  }
  func.func @transform_1(%arg0: i32, %arg1: i32) -> (i32, i32) {
    %c0_i32 = arith.constant 0 : i32
    %c0_i32_0 = arith.constant 0 : i32
    %c0_i32_1 = arith.constant 0 : i32
    return %c0_i32, %c0_i32_0 : i32, i32
  }
  func.func @transform_2(%arg0: i32, %arg1: i32) -> (i32, i32) {
    %c0_i32 = arith.constant 0 : i32
    %c0_i32_0 = arith.constant 0 : i32
    %c0_i32_1 = arith.constant 0 : i32
    return %c0_i32, %c0_i32_0 : i32, i32
  }
  func.func @transform_3(%arg0: i32, %arg1: i32) -> (i32, i32) {
    %c0_i32 = arith.constant 0 : i32
    %c0_i32_0 = arith.constant 0 : i32
    %c0_i32_1 = arith.constant 0 : i32
    return %c0_i32, %c0_i32_0 : i32, i32
  }
  func.func @transform_4(%arg0: i32, %arg1: i32) -> (i32, i32) {
    %c0_i32 = arith.constant 0 : i32
    %c0_i32_0 = arith.constant 0 : i32
    %c0_i32_1 = arith.constant 0 : i32
    return %c0_i32, %c0_i32_0 : i32, i32
  }
  func.func @transform_5(%arg0: i32, %arg1: i32) -> (i32, i32, i32) {
    %c0_i32 = arith.constant 0 : i32
    %c0_i32_0 = arith.constant 0 : i32
    return %arg0, %arg1, %c0_i32 : i32, i32, i32
  }
}

module attributes {stable_mosaic.version = 11 : i64} {
  func.func @qkv_proj_kernel(%arg0: i32, %arg1: i32, %arg2: memref<1x8x32xf32, #tpu.memory_space<vmem>>, %arg3: memref<1x32xf32, #tpu.memory_space<vmem>>, %arg4: memref<1x32xf32, #tpu.memory_space<vmem>>, %arg5: memref<32x96xbf16, #tpu.memory_space<vmem>>, %arg6: memref<1x96xf32, #tpu.memory_space<vmem>>, %arg7: memref<1x8x96xbf16, #tpu.memory_space<vmem>>) attributes {dimension_semantics = [#tpu.dimension_semantics<parallel>, #tpu.dimension_semantics<parallel>], iteration_bounds = array<i64: 2, 1>, scalar_prefetch = 0 : i64, scratch_operands = 0 : i64, tpu.core_type = #tpu.core_type<tc>, window_params = [{transform_indices = @transform_0, window_bounds = array<i64: 1, 8, 32>}, {pipeline_mode = #tpu.pipeline_mode<synchronous>, transform_indices = @transform_1, window_bounds = array<i64: 1, 32>}, {pipeline_mode = #tpu.pipeline_mode<synchronous>, transform_indices = @transform_2, window_bounds = array<i64: 1, 32>}, {pipeline_mode = #tpu.pipeline_mode<synchronous>, transform_indices = @transform_3, window_bounds = array<i64: 32, 96>}, {pipeline_mode = #tpu.pipeline_mode<synchronous>, transform_indices = @transform_4, window_bounds = array<i64: 1, 96>}, {transform_indices = @transform_5, window_bounds = array<i64: 1, 8, 96>}]} {
    %c0 = arith.constant 0 : index
    %c0_0 = arith.constant 0 : index
    %c0_1 = arith.constant 0 : index
    %0 = vector.load %arg2[%c0, %c0_0, %c0_1] : memref<1x8x32xf32, #tpu.memory_space<vmem>>, vector<1x8x32xf32>
    %1 = vector.shape_cast %0 : vector<1x8x32xf32> to vector<8x32xf32>
    %c0_2 = arith.constant 0 : index
    %c0_3 = arith.constant 0 : index
    %2 = vector.load %arg3[%c0_2, %c0_3] : memref<1x32xf32, #tpu.memory_space<vmem>>, vector<1x32xf32>
    %c0_4 = arith.constant 0 : index
    %c0_5 = arith.constant 0 : index
    %3 = vector.load %arg4[%c0_4, %c0_5] : memref<1x32xf32, #tpu.memory_space<vmem>>, vector<1x32xf32>
    %cst = arith.constant dense<0.000000e+00> : vector<8xf32>
    %4 = vector.multi_reduction <add>, %1, %cst [1] : vector<8x32xf32> to vector<8xf32>
    %5 = vector.shape_cast %4 : vector<8xf32> to vector<8x1xf32>
    %cst_6 = arith.constant 3.200000e+01 : f32
    %6 = vector.broadcast %cst_6 : f32 to vector<8x1xf32>
    %7 = arith.divf %5, %6 : vector<8x1xf32>
    %8 = vector.broadcast %7 : vector<8x1xf32> to vector<8x32xf32>
    %9 = arith.subf %1, %8 : vector<8x32xf32>
    %10 = arith.mulf %9, %9 : vector<8x32xf32>
    %cst_7 = arith.constant dense<0.000000e+00> : vector<8xf32>
    %11 = vector.multi_reduction <add>, %10, %cst_7 [1] : vector<8x32xf32> to vector<8xf32>
    %12 = vector.shape_cast %11 : vector<8xf32> to vector<8x1xf32>
    %cst_8 = arith.constant 3.200000e+01 : f32
    %13 = vector.broadcast %cst_8 : f32 to vector<8x1xf32>
    %14 = arith.divf %12, %13 : vector<8x1xf32>
    %cst_9 = arith.constant 9.99999974E-6 : f32
    %15 = vector.broadcast %cst_9 : f32 to vector<8x1xf32>
    %16 = arith.addf %14, %15 : vector<8x1xf32>
    %17 = math.rsqrt %16 : vector<8x1xf32>
    %18 = vector.broadcast %17 : vector<8x1xf32> to vector<8x32xf32>
    %19 = arith.mulf %9, %18 : vector<8x32xf32>
    %20 = vector.broadcast %2 : vector<1x32xf32> to vector<8x32xf32>
    %21 = arith.mulf %19, %20 : vector<8x32xf32>
    %22 = vector.broadcast %3 : vector<1x32xf32> to vector<8x32xf32>
    %23 = arith.addf %21, %22 : vector<8x32xf32>
    %24 = arith.truncf %23 : vector<8x32xf32> to vector<8x32xbf16>
    %c0_10 = arith.constant 0 : index
    %c0_11 = arith.constant 0 : index
    %25 = vector.load %arg5[%c0_10, %c0_11] : memref<32x96xbf16, #tpu.memory_space<vmem>>, vector<32x96xbf16>
    %cst_12 = arith.constant dense<0.000000e+00> : vector<8x96xf32>
    %26 = tpu.matmul %24, %25, %cst_12 {dimension_numbers = #tpu.dot_dimension_numbers<[1], [0], [0], [1], [0, 0, 1, 1], [], []>} : vector<8x32xbf16>, vector<32x96xbf16>, vector<8x96xf32> -> vector<8x96xf32>
    %c0_13 = arith.constant 0 : index
    %c0_14 = arith.constant 0 : index
    %27 = vector.load %arg6[%c0_13, %c0_14] : memref<1x96xf32, #tpu.memory_space<vmem>>, vector<1x96xf32>
    %28 = vector.broadcast %27 : vector<1x96xf32> to vector<8x96xf32>
    %29 = arith.addf %26, %28 : vector<8x96xf32>
    %30 = arith.truncf %29 : vector<8x96xf32> to vector<8x96xbf16>
    %c0_15 = arith.constant 0 : index
    %c0_16 = arith.constant 0 : index
    %c0_17 = arith.constant 0 : index
    %31 = vector.load %arg7[%c0_15, %c0_16, %c0_17] : memref<1x8x96xbf16, #tpu.memory_space<vmem>>, vector<1x8x96xbf16>
    %32 = vector.shape_cast %31 : vector<1x8x96xbf16> to vector<8x96xbf16>
    %33 = vector.shape_cast %30 : vector<8x96xbf16> to vector<1x8x96xbf16>
    tpu.vector_store %arg7[%c0_15, %c0_16, %c0_17], %33 {strides = array<i32>} : memref<1x8x96xbf16, #tpu.memory_space<vmem>>, vector<1x8x96xbf16>,
    return
  }
  func.func @transform_0(%arg0: i32, %arg1: i32) -> (i32, i32, i32) {
    %c0_i32 = arith.constant 0 : i32
    %c0_i32_0 = arith.constant 0 : i32
    return %arg0, %arg1, %c0_i32 : i32, i32, i32
  }
  func.func @transform_1(%arg0: i32, %arg1: i32) -> (i32, i32) {
    %c0_i32 = arith.constant 0 : i32
    %c0_i32_0 = arith.constant 0 : i32
    %c0_i32_1 = arith.constant 0 : i32
    return %c0_i32, %c0_i32_0 : i32, i32
  }
  func.func @transform_2(%arg0: i32, %arg1: i32) -> (i32, i32) {
    %c0_i32 = arith.constant 0 : i32
    %c0_i32_0 = arith.constant 0 : i32
    %c0_i32_1 = arith.constant 0 : i32
    return %c0_i32, %c0_i32_0 : i32, i32
  }
  func.func @transform_3(%arg0: i32, %arg1: i32) -> (i32, i32) {
    %c0_i32 = arith.constant 0 : i32
    %c0_i32_0 = arith.constant 0 : i32
    %c0_i32_1 = arith.constant 0 : i32
    return %c0_i32, %c0_i32_0 : i32, i32
  }
  func.func @transform_4(%arg0: i32, %arg1: i32) -> (i32, i32) {
    %c0_i32 = arith.constant 0 : i32
    %c0_i32_0 = arith.constant 0 : i32
    %c0_i32_1 = arith.constant 0 : i32
    return %c0_i32, %c0_i32_0 : i32, i32
  }
  func.func @transform_5(%arg0: i32, %arg1: i32) -> (i32, i32, i32) {
    %c0_i32 = arith.constant 0 : i32
    %c0_i32_0 = arith.constant 0 : i32
    return %arg0, %arg1, %c0_i32 : i32, i32, i32
  }
}

</mosaic_0001>

<llo_original>
// kernel: tpu_custom_call.1
$region0: #{tpu_custom_call.1}
  #allocation0 [shape = 'u32[]', space=smem, size = 0x4, offset = 0x4, fixed_abs, tag = 'smem constant byte address 0x4 - core index']
  #allocation1 [shape = 'u32[144,128]{1,0:T(1,128)}', space=vmem, size = 0x12000, scoped, tag = 'internal scratch']
  %s0 = inlined_call_operand.hbm [shape: f32[2,8,32], index: 0, kind: input, shape index: {}]
  %s1 = inlined_call_operand.vmem [shape: f32[1,32], index: 1, kind: input, shape index: {}]
  %s2 = inlined_call_operand.vmem [shape: f32[1,32], index: 2, kind: input, shape index: {}]
  %s3 = inlined_call_operand.hbm [shape: bf16[32,96], index: 3, kind: input, shape index: {}]
  %s4 = inlined_call_operand.vmem [shape: f32[1,96], index: 4, kind: input, shape index: {}]
  %s5 = inlined_call_operand.hbm [shape: bf16[2,8,96], index: 5, kind: output, shape index: {}]
  %s6 = sld [smem:[#allocation0]]
  $region61: #{tpu_custom_call.1} parent=0
    _
  %s8 = ssub.s32 1, %s6
  %s9 = scalar_select 0, %s8, %s6
  $region1: #{tpu_custom_call.1} parent=0
    #allocation2 [shape = 'u8[8192]{0}', space=vmem, size = 0x2000, scoped, tag = 'input window, operand 0']
    #allocation3 [shape = 's32[2]{0}', space=sflag, size = 0x8, scoped, tag = 'scoped memory for tpu_custom_call.1']
    #allocation4 [shape = 's32[2]{0}', space=sflag, size = 0x8, scoped, tag = 'scoped memory for tpu_custom_call.1']
    #allocation5 [shape = 'u8[8192]{0}', space=vmem, size = 0x2000, scoped, tag = 'input window, operand 3, single buffered']
    #allocation6 [shape = 's32[1]{0}', space=sflag, size = 0x4, scoped, tag = 'scoped memory for tpu_custom_call.1']
    #allocation7 [shape = 'u8[4096]{0}', space=vmem, size = 0x1000, scoped, tag = 'output window, operand 0']
    %10 = vsyncpa [#allocation3], 0
    %s11 = scalar_lea.sflag [#allocation3], 1
    %12 = vsyncpa %s11, 0
    %13 = vsyncpa [#allocation6], 0
    %14 = vsyncpa [#allocation4], 0
    %s15 = scalar_lea.sflag [#allocation4], 1
    %16 = vsyncpa %s15, 0
    loop: start=0, step=1, limit=4
    $region2: #{tpu_custom_call.1} parent=1 // loop_pre_header
      _
    $region3: #{tpu_custom_call.1} parent=1 // loop_header
      %s18 = sphi 0, %s22
      %p19 = scmp.ge.s32.totalorder %s18, 4
      %s25 = sphi 0, %s37
      %s26 = sphi 0, %s33
      %s27 = sphi 0, %s25
      %s28 = sphi 0, %s26
      %s29 = sphi 0, %s27
      %s30 = sphi 0, %s28
      %s42 = sphi 0, %s44
      %s45 = sphi 0, %s42
      %s46 = sphi 0, %s45
      %s62 = sphi 0, %s46
      %s66 = sphi 0, %s66
      %s68 = sphi 0, %s66
      %s69 = sphi 0, %s68
      %s83 = sphi 0, %s69
      %s87 = sphi 0, %s87
      %s89 = sphi 0, %s87
      %s90 = sphi 0, %s89
      %s104 = sphi 0, %s90
      %s108 = sphi 0, %s108
      %s110 = sphi 0, %s108
      %s111 = sphi 0, %s110
      %s125 = sphi 0, %s111
      %s129 = sphi 0, %s129
      %s131 = sphi 0, %s129
      %s132 = sphi 0, %s131
      %s146 = sphi 0, %s132
      %s154 = sphi 0, %s156
      %s157 = sphi 0, %s154
      %s158 = sphi 0, %s157
      %s174 = sphi 0, %s158
    $region4: #{tpu_custom_call.1} parent=1 // loop_header_branch
      %21 = sbr.rel (%p19) target = $region8
    $region5: #{tpu_custom_call.1} parent=1 // loop_body
      %s23 = ssub.s32 %s18, 1
      %s24 = ssub.s32 %s18, 2
      %s31 = sadd.s32 1, %s26
      %p32 = scmp.ge.s32.totalorder %s31, 1
      %s33 = scalar_select %p32, 0, %s31
      %s34 = sadd.s32 1, %s25
      %s35 = scalar_select %p32, %s34, %s25
      %p36 = scmp.ge.s32.totalorder %s35, 2
      %s37 = scalar_select %p36, 0, %s35
      %s38 = ssub.s32 %s25, %s37
      %s39 = ssub.s32 %s26, %s33
      %s40 = sor.u32 %s38, %s39
      %p41 = scmp.eq.s32.totalorder %s40, 0
      %s43 = sadd.s32 %s42, 1
      %s44 = scalar_select %p41, %s42, %s43
      %p47 = pneg %p41
      %p48 = scmp.eq.s32.totalorder %s18, 1
      %p49 = por %p47, %p48
      %p50 = scmp.ne.s32.totalorder %s42, %s45
      %p51 = scmp.eq.s32.totalorder %s18, 0
      %p52 = por %p50, %p51
      %p53 = scmp.ne.s32.totalorder %s42, %s45
      %p54 = scmp.eq.s32.totalorder %s23, 1
      %p55 = por %p53, %p54
      %p56 = scmp.ne.s32.totalorder %s45, %s46
      %p57 = scmp.eq.s32.totalorder %s23, 0
      %p58 = por %p56, %p57
      %p59 = scmp.ne.s32.totalorder %s45, %s46
      %p60 = scmp.eq.s32.totalorder %s24, 1
      %p61 = por %p59, %p60
      %p63 = scmp.ne.s32.totalorder %s46, %s62
      %p64 = scmp.eq.s32.totalorder %s24, 0
      %p65 = por %p63, %p64
      %s67 = sadd.s32 %s66, 1
      %p70 = scmp.eq.s32.totalorder %s18, 1
      %p71 = scmp.ne.s32.totalorder %s66, %s68
      %p72 = scmp.eq.s32.totalorder %s18, 0
      %p73 = por %p71, %p72
      %p74 = scmp.ne.s32.totalorder %s66, %s68
      %p75 = scmp.eq.s32.totalorder %s23, 1
      %p76 = por %p74, %p75
      %p77 = scmp.ne.s32.totalorder %s68, %s69
      %p78 = scmp.eq.s32.totalorder %s23, 0
      %p79 = por %p77, %p78
      %p80 = scmp.ne.s32.totalorder %s68, %s69
      %p81 = scmp.eq.s32.totalorder %s24, 1
      %p82 = por %p80, %p81
      %p84 = scmp.ne.s32.totalorder %s69, %s83
      %p85 = scmp.eq.s32.totalorder %s24, 0
      %p86 = por %p84, %p85
      %s88 = sadd.s32 %s87, 1
      %p91 = scmp.eq.s32.totalorder %s18, 1
      %p92 = scmp.ne.s32.totalorder %s87, %s89
      %p93 = scmp.eq.s32.totalorder %s18, 0
      %p94 = por %p92, %p93
      %p95 = scmp.ne.s32.totalorder %s87, %s89
      %p96 = scmp.eq.s32.totalorder %s23, 1
      %p97 = por %p95, %p96
      %p98 = scmp.ne.s32.totalorder %s89, %s90
      %p99 = scmp.eq.s32.totalorder %s23, 0
      %p100 = por %p98, %p99
      %p101 = scmp.ne.s32.totalorder %s89, %s90
      %p102 = scmp.eq.s32.totalorder %s24, 1
      %p103 = por %p101, %p102
      %p105 = scmp.ne.s32.totalorder %s90, %s104
      %p106 = scmp.eq.s32.totalorder %s24, 0
      %p107 = por %p105, %p106
      %s109 = sadd.s32 %s108, 1
      %p112 = scmp.eq.s32.totalorder %s18, 1
      %p113 = scmp.ne.s32.totalorder %s108, %s110
      %p114 = scmp.eq.s32.totalorder %s18, 0
      %p115 = por %p113, %p114
      %p116 = scmp.ne.s32.totalorder %s108, %s110
      %p117 = scmp.eq.s32.totalorder %s23, 1
      %p118 = por %p116, %p117
      %p119 = scmp.ne.s32.totalorder %s110, %s111
      %p120 = scmp.eq.s32.totalorder %s23, 0
      %p121 = por %p119, %p120
      %p122 = scmp.ne.s32.totalorder %s110, %s111
      %p123 = scmp.eq.s32.totalorder %s24, 1
      %p124 = por %p122, %p123
      %p126 = scmp.ne.s32.totalorder %s111, %s125
      %p127 = scmp.eq.s32.totalorder %s24, 0
      %p128 = por %p126, %p127
      %s130 = sadd.s32 %s129, 1
      %p133 = scmp.eq.s32.totalorder %s18, 1
      %p134 = scmp.ne.s32.totalorder %s129, %s131
      %p135 = scmp.eq.s32.totalorder %s18, 0
      %p136 = por %p134, %p135
      %p137 = scmp.ne.s32.totalorder %s129, %s131
      %p138 = scmp.eq.s32.totalorder %s23, 1
      %p139 = por %p137, %p138
      %p140 = scmp.ne.s32.totalorder %s131, %s132
      %p141 = scmp.eq.s32.totalorder %s23, 0
      %p142 = por %p140, %p141
      %p143 = scmp.ne.s32.totalorder %s131, %s132
      %p144 = scmp.eq.s32.totalorder %s24, 1
      %p145 = por %p143, %p144
      %p147 = scmp.ne.s32.totalorder %s132, %s146
      %p148 = scmp.eq.s32.totalorder %s24, 0
      %p149 = por %p147, %p148
      %s150 = ssub.s32 %s25, %s37
      %s151 = ssub.s32 %s26, %s33
      %s152 = sor.u32 %s150, %s151
      %p153 = scmp.eq.s32.totalorder %s152, 0
      %s155 = sadd.s32 %s154, 1
      %s156 = scalar_select %p153, %s154, %s155
      %p159 = pneg %p153
      %p160 = scmp.eq.s32.totalorder %s18, 1
      %p161 = por %p159, %p160
      %p162 = scmp.ne.s32.totalorder %s154, %s157
      %p163 = scmp.eq.s32.totalorder %s18, 0
      %p164 = por %p162, %p163
      %p165 = scmp.ne.s32.totalorder %s154, %s157
      %p166 = scmp.eq.s32.totalorder %s23, 1
      %p167 = por %p165, %p166
      %p168 = scmp.ne.s32.totalorder %s157, %s158
      %p169 = scmp.eq.s32.totalorder %s23, 0
      %p170 = por %p168, %p169
      %p171 = scmp.ne.s32.totalorder %s157, %s158
      %p172 = scmp.eq.s32.totalorder %s24, 1
      %p173 = por %p171, %p172
      %p175 = scmp.ne.s32.totalorder %s158, %s174
      %p176 = scmp.eq.s32.totalorder %s24, 0
      %p177 = por %p175, %p176
      %p178 = scmp.le.s32.totalorder 1, %s18
      %p179 = scmp.lt.s32.totalorder %s18, 3
      %p180 = pnand %p178, %p179
      %p181 = pneg %p180
      // Predicated region
      $region9: #{tpu_custom_call.1} parent=5 // pred_check
        _
      $region10: #{tpu_custom_call.1} parent=5 // pred_check_branch
        %183 = sbr.rel (%p180) target = $region12
      $region11: #{tpu_custom_call.1} parent=5 // pred_region
        %s184 = ssub.s32 %s18, 1
        // Predicated region
        $region13: #{tpu_custom_call.1} parent=11 // pred_check
          %p185 = pneg %p79
        $region14: #{tpu_custom_call.1} parent=11 // pred_check_branch
          %187 = sbr.rel (%p185) target = $region16
        $region15: #{tpu_custom_call.1} parent=11 // pred_region
          _
        $region16: #{tpu_custom_call.1} parent=11 // pred_fallthru
          _
        // Predicated region
        $region17: #{tpu_custom_call.1} parent=11 // pred_check
          %p188 = pneg %p100
        $region18: #{tpu_custom_call.1} parent=11 // pred_check_branch
          %190 = sbr.rel (%p188) target = $region20
        $region19: #{tpu_custom_call.1} parent=11 // pred_region
          _
        $region20: #{tpu_custom_call.1} parent=11 // pred_fallthru
          _
        // Predicated region
        $region21: #{tpu_custom_call.1} parent=11 // pred_check
          %p191 = pneg %p121
        $region22: #{tpu_custom_call.1} parent=11 // pred_check_branch
          %193 = sbr.rel (%p191) target = $region24
        $region23: #{tpu_custom_call.1} parent=11 // pred_region
          %s195 = ssub.s32 256, 256
          %196 = vsyncadd [#allocation6], %s195
          %s197 = sshll.u32 [#allocation5], 4
          %s198 = int_to_ptr.vmem [resolvable:$true] %s197
          %203 = dma.hbm_to_vmem [thread:$0]  %s3, 256, %s198, [#allocation6], 64, 64, 4
        $region24: #{tpu_custom_call.1} parent=11 // pred_fallthru
          _
        // Predicated region
        $region25: #{tpu_custom_call.1} parent=11 // pred_check
          %p204 = pneg %p142
        $region26: #{tpu_custom_call.1} parent=11 // pred_check_branch
          %206 = sbr.rel (%p204) target = $region28
        $region27: #{tpu_custom_call.1} parent=11 // pred_region
          _
        $region28: #{tpu_custom_call.1} parent=11 // pred_fallthru
          _
      $region12: #{tpu_custom_call.1} parent=5 // pred_fallthru
        _
      %p207 = scmp.lt.s32.totalorder %s18, 2
      // Predicated region
      $region29: #{tpu_custom_call.1} parent=5 // pred_check
        %p208 = pneg %p207
      $region30: #{tpu_custom_call.1} parent=5 // pred_check_branch
        %210 = sbr.rel (%p208) target = $region32
      $region31: #{tpu_custom_call.1} parent=5 // pred_region
        // Predicated region
        $region33: #{tpu_custom_call.1} parent=31 // pred_check
          %p211 = pneg %p52
        $region34: #{tpu_custom_call.1} parent=31 // pred_check_branch
          %213 = sbr.rel (%p211) target = $region36
        $region35: #{tpu_custom_call.1} parent=31 // pred_region
          %s214 = sand.u32 %s42, 1
          %s215 = scalar_lea.sflag [#allocation3], %s214
          %s216 = sand.u32 %s42, 1
          %s217 = smul.addr %s216, 8
          %s218 = scalar_lea.vmem [#allocation2], %s217
          %s220 = ssub.s32 128, 128
          %221 = vsyncadd %s215, %s220
          %s222 = sadd.s32 %s26, %s25
          %s223 = smul.addr %s222, 128
          %s224 = scalar_lea.hbm %s0, %s223
          %s226 = sshll.u32 %s218, 4
          %s227 = int_to_ptr.vmem [resolvable:$true] %s226
          %229 = dma.hbm_to_vmem [thread:$0]  %s224, 128, %s227, %s215
        $region36: #{tpu_custom_call.1} parent=31 // pred_fallthru
          _
      $region32: #{tpu_custom_call.1} parent=5 // pred_fallthru
        _
      %p230 = scmp.le.s32.totalorder 1, %s18
      %p231 = scmp.lt.s32.totalorder %s18, 3
      %p232 = pnand %p230, %p231
      %p233 = pneg %p232
      // Predicated region
      $region37: #{tpu_custom_call.1} parent=5 // pred_check
        _
      $region38: #{tpu_custom_call.1} parent=5 // pred_check_branch
        %235 = sbr.rel (%p232) target = $region40
      $region39: #{tpu_custom_call.1} parent=5 // pred_region
        %s236 = ssub.s32 %s18, 1
        %s237 = sand.u32 %s45, 1
        %s238 = scalar_lea.sflag [#allocation3], %s237
        %s239 = sand.u32 %s45, 1
        %s240 = smul.addr %s239, 8
        %s241 = scalar_lea.vmem [#allocation2], %s240
        // Predicated region
        $region41: #{tpu_custom_call.1} parent=39 // pred_check
          %p242 = pneg %p58
        $region42: #{tpu_custom_call.1} parent=39 // pred_check_branch
          %244 = sbr.rel (%p242) target = $region44
        $region43: #{tpu_custom_call.1} parent=39 // pred_region
          %245 = dma.done %s238, 128
        $region44: #{tpu_custom_call.1} parent=39 // pred_fallthru
          _
        // Predicated region
        $region45: #{tpu_custom_call.1} parent=39 // pred_check
          %p246 = pneg %p121
        $region46: #{tpu_custom_call.1} parent=39 // pred_check_branch
          %248 = sbr.rel (%p246) target = $region48
        $region47: #{tpu_custom_call.1} parent=39 // pred_region
          %249 = dma.done [#allocation6], 256
        $region48: #{tpu_custom_call.1} parent=39 // pred_fallthru
          _
        %s250 = sand.u32 %s45, 1
        %s251 = scalar_lea.sflag [#allocation3], %s250
        %s252 = sand.u32 %s45, 1
        %s253 = smul.addr %s252, 8
        %s254 = scalar_lea.vmem [#allocation2], %s253
        %p255 = pneg %p58
        %p256 = pneg %p55
        %p257 = pneg %p79
        %p258 = pneg %p76
        %p259 = pneg %p100
        %p260 = pneg %p97
        %p261 = pneg %p121
        %p262 = pneg %p118
        %p263 = pneg %p142
        %p264 = pneg %p139
        %p265 = pneg %p170
        %p266 = pneg %p167
        %s267 = sand.u32 %s157, 1
        %s268 = scalar_lea.sflag [#allocation4], %s267
        %s269 = sand.u32 %s157, 1
        %s270 = smul.addr %s269, 4
        %s271 = scalar_lea.vmem [#allocation7], %s270
        %v273 = vld [vmem:[%s241] sm:$0xff]
        %v274 = vld [vmem:[%s1] sm:$0x1]
        %v275 = vld [vmem:[%s2] sm:$0x1]
        %vm276 = vcmask 261120
        %v277 = vsel %vm276, %v273, 0.0
        %278 = vadd.xlane.f32.xlu0 %v277
        %v279 = vpop.xlane.xlu0 %278
        %v280 = vrcp.pop 32.0
        %v281 = vmul.f32 %v279, %v280
        %v282 = vsub.f32 %v273, %v281
        %v283 = vmul.f32 %v282, %v282
        %v284 = vsel %vm276, %v283, 0.0
        %285 = vadd.xlane.f32.xlu0 %v284
        %v286 = vpop.xlane.xlu0 %285
        %v287 = vmul.f32 %v286, %v280
        %v288 = vadd.f32 %v287, 1e-05
        %v289 = vrsqrt.pop %v288
        %v290 = vmul.f32 %v282, %v289
        %v292 = vlaneseq
        %v293 = vshrl.u32 %v292, 7
        %v294 = vsub.s32 0, %v293
        %v295 = vrot.slane %v274, %v294
        %v297 = vmul.f32 %v290, %v295
        %v299 = vlaneseq
        %v300 = vshrl.u32 %v299, 7
        %v301 = vsub.s32 0, %v300
        %v302 = vrot.slane %v275, %v301
        %v304 = vadd.f32 %v297, %v302
        %v305 = vpack.c.bf16 %v304, %v304
        %v306 = vld [vmem:[#allocation5] sm:$0xf]
        %v307 = vld [vmem:[#allocation5 + $0x4] sm:$0xf]
        %v308 = vld [vmem:[#allocation5 + $0x8] sm:$0xf]
        %v309 = vld [vmem:[#allocation5 + $0xc] sm:$0xf]
        %v310 = vld [vmem:[%s4] sm:$0x1]
        %v312 = vlaneseq
        %v313 = vshrl.u32 %v312, 7
        %v314 = vsub.s32 0, %v313
        %v315 = vrot.slane %v310, %v314
        %v321 = vunpack.c.l.b16 %v306
        %v322 = vunpack.c.l.b16 %v307
        %v323 = vunpack.c.l.b16 %v308
        %v324 = vunpack.c.l.b16 %v309
        %v325 = vpack.c.b16 %v322, %v321
        %v326 = vpack.c.b16 %v324, %v323
        %v330 = vsel %vm276, %v305, 0
        %332 = vmatprep.subr.bf16.mxu0 0
        %333 = vmatpush1.bf16.msra.mxu0 0
        %334 = vmatprep.subr.bf16.mxu0 0
        %335 = vmatpush1.bf16.msra.mxu0 0
        %336 = vmatprep.subr.bf16.mxu0 0
        %337 = vmatpush1.bf16.msra.mxu0 0
        %338 = vmatprep.subr.bf16.mxu0 0
        %339 = vmatpush1.bf16.msra.mxu0 0
        %340 = vmatprep.subr.bf16.mxu0 0
        %341 = vmatpush1.bf16.msra.mxu0 0
        %342 = vmatprep.subr.bf16.mxu0 0
        %343 = vmatpush1.bf16.msra.mxu0 0
        %344 = vmatprep.subr.bf16.mxu0 0
        %345 = vmatpush1.bf16.msra.mxu0 %v326
        %346 = vmatprep.subr.bf16.mxu0 0
        %347 = vmatpush1.bf16.msra.mxu0 %v325
        %348 = vmatprep.subr.bf16.mxu0 0
        %349 = vmatpush2.bf16.msra.mxu0 0
        %350 = vmatprep.subr.bf16.mxu0 0
        %351 = vmatpush2.bf16.msra.mxu0 0
        %352 = vmatprep.subr.bf16.mxu0 0
        %353 = vmatpush2.bf16.msra.mxu0 0
        %354 = vmatprep.subr.bf16.mxu0 0
        %355 = vmatpush2.bf16.msra.mxu0 0
        %356 = vmatprep.subr.bf16.mxu0 0
        %357 = vmatpush2.bf16.msra.mxu0 0
        %358 = vmatprep.subr.bf16.mxu0 0
        %359 = vmatpush2.bf16.msra.mxu0 0
        %360 = vmatprep.subr.bf16.mxu0 0
        %361 = vmatpush2.bf16.msra.mxu0 0
        %362 = vmatprep.subr.bf16.mxu0 0
        %363 = vmatpush2.bf16.msra.mxu0 0
        %364 = vmatprep.mubr.bf16.mxu0 0
        %365 = vmatmul.mubr.bf16.gmra.mxu0 %v330
        %v366 = vpop.f32.mrf.mxu0
        %v367 = vadd.f32 %v315, %v366
        %v368 = vpop.f32.mrf.mxu0
        %v369 = vpop.f32.mrf.mxu0
        %v370 = vpop.f32.mrf.mxu0
        %371 = vdwg.mxu0
        %v372 = vpack.c.bf16 %v367, %v367
        %vm373 = vcmask 781312
        %374 = vst.msk [vmem:[%s271] sm:$0xf] %vm373, %v372
        %s375 = sand.u32 %s157, 1
        %s376 = scalar_lea.sflag [#allocation4], %s375
        %s377 = sand.u32 %s157, 1
        %s378 = smul.addr %s377, 4
        %s379 = scalar_lea.vmem [#allocation7], %s378
        // Predicated region
        $region49: #{tpu_custom_call.1} parent=39 // pred_check
          %p380 = pneg %p167
        $region50: #{tpu_custom_call.1} parent=39 // pred_check_branch
          %382 = sbr.rel (%p380) target = $region52
        $region51: #{tpu_custom_call.1} parent=39 // pred_region
          %s384 = ssub.s32 64, 64
          %385 = vsyncadd %s376, %s384
          %s386 = sadd.s32 %s28, %s27
          %s387 = smul.addr %s386, 64
          %s388 = scalar_lea.hbm %s5, %s387
          %s390 = sshll.u32 %s379, 4
          %s391 = int_to_ptr.vmem [resolvable:$true] %s390
          %393 = dma.vmem_to_hbm [thread:$0]  %s391, 64, %s388, %s376
        $region52: #{tpu_custom_call.1} parent=39 // pred_fallthru
          _
      $region40: #{tpu_custom_call.1} parent=5 // pred_fallthru
        _
      %p394 = scmp.le.s32.totalorder 2, %s18
      // Predicated region
      $region53: #{tpu_custom_call.1} parent=5 // pred_check
        %p395 = pneg %p394
      $region54: #{tpu_custom_call.1} parent=5 // pred_check_branch
        %397 = sbr.rel (%p395) target = $region56
      $region55: #{tpu_custom_call.1} parent=5 // pred_region
        %s398 = ssub.s32 %s18, 2
        // Predicated region
        $region57: #{tpu_custom_call.1} parent=55 // pred_check
          %p399 = pneg %p173
        $region58: #{tpu_custom_call.1} parent=55 // pred_check_branch
          %401 = sbr.rel (%p399) target = $region60
        $region59: #{tpu_custom_call.1} parent=55 // pred_region
          %s402 = sand.u32 %s158, 1
          %s403 = scalar_lea.sflag [#allocation4], %s402
          %s404 = sand.u32 %s158, 1
          %s405 = smul.addr %s404, 4
          %s406 = scalar_lea.vmem [#allocation7], %s405
          %407 = dma.done %s403, 64
        $region60: #{tpu_custom_call.1} parent=55 // pred_fallthru
          _
      $region56: #{tpu_custom_call.1} parent=5 // pred_fallthru
        _
    $region6: #{tpu_custom_call.1} parent=1 // loop_footer
      %s22 = sadd.s32 1, %s18
    $region7: #{tpu_custom_call.1} parent=1 // loop_footer_branch
      %17 = sbr.rel target = $region3
    $region8: #{tpu_custom_call.1} parent=1 // loop_exit
      _
    %408 = vsyncpa [#allocation3], 1
    %s409 = scalar_lea.sflag [#allocation3], 1
    %410 = vsyncpa %s409, 1
    %411 = vsyncpa [#allocation6], 1
    %412 = vsyncpa [#allocation4], 1
    %s413 = scalar_lea.sflag [#allocation4], 1
    %414 = vsyncpa %s413, 1

// kernel: tpu_custom_call.1
$region0: #{tpu_custom_call.1}
  #allocation0 [shape = 'u32[]', space=smem, size = 0x4, offset = 0x4, fixed_abs, tag = 'smem constant byte address 0x4 - core index']
  #allocation1 [shape = 'u32[144,128]{1,0:T(1,128)}', space=vmem, size = 0x12000, scoped, tag = 'internal scratch']
  %s0 = inlined_call_operand.hbm [shape: f32[2,8,32], index: 0, kind: input, shape index: {}]
  %s1 = inlined_call_operand.vmem [shape: f32[1,32], index: 1, kind: input, shape index: {}]
  %s2 = inlined_call_operand.vmem [shape: f32[1,32], index: 2, kind: input, shape index: {}]
  %s3 = inlined_call_operand.hbm [shape: bf16[32,96], index: 3, kind: input, shape index: {}]
  %s4 = inlined_call_operand.vmem [shape: f32[1,96], index: 4, kind: input, shape index: {}]
  %s5 = inlined_call_operand.hbm [shape: bf16[2,8,96], index: 5, kind: output, shape index: {}]
  %s6 = sld [smem:[#allocation0]]
  $region61: #{tpu_custom_call.1} parent=0
    _
  %s8 = ssub.s32 1, %s6
  %s9 = scalar_select 0, %s8, %s6
  $region1: #{tpu_custom_call.1} parent=0
    #allocation2 [shape = 'u8[8192]{0}', space=vmem, size = 0x2000, scoped, tag = 'input window, operand 0']
    #allocation3 [shape = 's32[2]{0}', space=sflag, size = 0x8, scoped, tag = 'scoped memory for tpu_custom_call.1']
    #allocation4 [shape = 's32[2]{0}', space=sflag, size = 0x8, scoped, tag = 'scoped memory for tpu_custom_call.1']
    #allocation5 [shape = 'u8[8192]{0}', space=vmem, size = 0x2000, scoped, tag = 'input window, operand 3, single buffered']
    #allocation6 [shape = 's32[1]{0}', space=sflag, size = 0x4, scoped, tag = 'scoped memory for tpu_custom_call.1']
    #allocation7 [shape = 'u8[4096]{0}', space=vmem, size = 0x1000, scoped, tag = 'output window, operand 0']
    %10 = vsyncpa [#allocation3], 0
    %s11 = scalar_lea.sflag [#allocation3], 1
    %12 = vsyncpa %s11, 0
    %13 = vsyncpa [#allocation6], 0
    %14 = vsyncpa [#allocation4], 0
    %s15 = scalar_lea.sflag [#allocation4], 1
    %16 = vsyncpa %s15, 0
    loop: start=0, step=1, limit=4
    $region2: #{tpu_custom_call.1} parent=1 // loop_pre_header
      _
    $region3: #{tpu_custom_call.1} parent=1 // loop_header
      %s18 = sphi 0, %s22
      %p19 = scmp.ge.s32.totalorder %s18, 4
      %s25 = sphi 0, %s37
      %s26 = sphi 0, %s33
      %s27 = sphi 0, %s25
      %s28 = sphi 0, %s26
      %s29 = sphi 0, %s27
      %s30 = sphi 0, %s28
      %s42 = sphi 0, %s44
      %s45 = sphi 0, %s42
      %s46 = sphi 0, %s45
      %s62 = sphi 0, %s46
      %s66 = sphi 0, %s66
      %s68 = sphi 0, %s66
      %s69 = sphi 0, %s68
      %s83 = sphi 0, %s69
      %s87 = sphi 0, %s87
      %s89 = sphi 0, %s87
      %s90 = sphi 0, %s89
      %s104 = sphi 0, %s90
      %s108 = sphi 0, %s108
      %s110 = sphi 0, %s108
      %s111 = sphi 0, %s110
      %s125 = sphi 0, %s111
      %s129 = sphi 0, %s129
      %s131 = sphi 0, %s129
      %s132 = sphi 0, %s131
      %s146 = sphi 0, %s132
      %s154 = sphi 0, %s156
      %s157 = sphi 0, %s154
      %s158 = sphi 0, %s157
      %s174 = sphi 0, %s158
    $region4: #{tpu_custom_call.1} parent=1 // loop_header_branch
      %21 = sbr.rel (%p19) target = $region8
    $region5: #{tpu_custom_call.1} parent=1 // loop_body
      %s23 = ssub.s32 %s18, 1
      %s24 = ssub.s32 %s18, 2
      %s31 = sadd.s32 1, %s26
      %p32 = scmp.ge.s32.totalorder %s31, 1
      %s33 = scalar_select %p32, 0, %s31
      %s34 = sadd.s32 1, %s25
      %s35 = scalar_select %p32, %s34, %s25
      %p36 = scmp.ge.s32.totalorder %s35, 2
      %s37 = scalar_select %p36, 0, %s35
      %s38 = ssub.s32 %s25, %s37
      %s39 = ssub.s32 %s26, %s33
      %s40 = sor.u32 %s38, %s39
      %p41 = scmp.eq.s32.totalorder %s40, 0
      %s43 = sadd.s32 %s42, 1
      %s44 = scalar_select %p41, %s42, %s43
      %p47 = pneg %p41
      %p48 = scmp.eq.s32.totalorder %s18, 1
      %p49 = por %p47, %p48
      %p50 = scmp.ne.s32.totalorder %s42, %s45
      %p51 = scmp.eq.s32.totalorder %s18, 0
      %p52 = por %p50, %p51
      %p53 = scmp.ne.s32.totalorder %s42, %s45
      %p54 = scmp.eq.s32.totalorder %s23, 1
      %p55 = por %p53, %p54
      %p56 = scmp.ne.s32.totalorder %s45, %s46
      %p57 = scmp.eq.s32.totalorder %s23, 0
      %p58 = por %p56, %p57
      %p59 = scmp.ne.s32.totalorder %s45, %s46
      %p60 = scmp.eq.s32.totalorder %s24, 1
      %p61 = por %p59, %p60
      %p63 = scmp.ne.s32.totalorder %s46, %s62
      %p64 = scmp.eq.s32.totalorder %s24, 0
      %p65 = por %p63, %p64
      %s67 = sadd.s32 %s66, 1
      %p70 = scmp.eq.s32.totalorder %s18, 1
      %p71 = scmp.ne.s32.totalorder %s66, %s68
      %p72 = scmp.eq.s32.totalorder %s18, 0
      %p73 = por %p71, %p72
      %p74 = scmp.ne.s32.totalorder %s66, %s68
      %p75 = scmp.eq.s32.totalorder %s23, 1
      %p76 = por %p74, %p75
      %p77 = scmp.ne.s32.totalorder %s68, %s69
      %p78 = scmp.eq.s32.totalorder %s23, 0
      %p79 = por %p77, %p78
      %p80 = scmp.ne.s32.totalorder %s68, %s69
      %p81 = scmp.eq.s32.totalorder %s24, 1
      %p82 = por %p80, %p81
      %p84 = scmp.ne.s32.totalorder %s69, %s83
      %p85 = scmp.eq.s32.totalorder %s24, 0
      %p86 = por %p84, %p85
      %s88 = sadd.s32 %s87, 1
      %p91 = scmp.eq.s32.totalorder %s18, 1
      %p92 = scmp.ne.s32.totalorder %s87, %s89
      %p93 = scmp.eq.s32.totalorder %s18, 0
      %p94 = por %p92, %p93
      %p95 = scmp.ne.s32.totalorder %s87, %s89
      %p96 = scmp.eq.s32.totalorder %s23, 1
      %p97 = por %p95, %p96
      %p98 = scmp.ne.s32.totalorder %s89, %s90
      %p99 = scmp.eq.s32.totalorder %s23, 0
      %p100 = por %p98, %p99
      %p101 = scmp.ne.s32.totalorder %s89, %s90
      %p102 = scmp.eq.s32.totalorder %s24, 1
      %p103 = por %p101, %p102
      %p105 = scmp.ne.s32.totalorder %s90, %s104
      %p106 = scmp.eq.s32.totalorder %s24, 0
      %p107 = por %p105, %p106
      %s109 = sadd.s32 %s108, 1
      %p112 = scmp.eq.s32.totalorder %s18, 1
      %p113 = scmp.ne.s32.totalorder %s108, %s110
      %p114 = scmp.eq.s32.totalorder %s18, 0
      %p115 = por %p113, %p114
      %p116 = scmp.ne.s32.totalorder %s108, %s110
      %p117 = scmp.eq.s32.totalorder %s23, 1
      %p118 = por %p116, %p117
      %p119 = scmp.ne.s32.totalorder %s110, %s111
      %p120 = scmp.eq.s32.totalorder %s23, 0
      %p121 = por %p119, %p120
      %p122 = scmp.ne.s32.totalorder %s110, %s111
      %p123 = scmp.eq.s32.totalorder %s24, 1
      %p124 = por %p122, %p123
      %p126 = scmp.ne.s32.totalorder %s111, %s125
      %p127 = scmp.eq.s32.totalorder %s24, 0
      %p128 = por %p126, %p127
      %s130 = sadd.s32 %s129, 1
      %p133 = scmp.eq.s32.totalorder %s18, 1
      %p134 = scmp.ne.s32.totalorder %s129, %s131
      %p135 = scmp.eq.s32.totalorder %s18, 0
      %p136 = por %p134, %p135
      %p137 = scmp.ne.s32.totalorder %s129, %s131
      %p138 = scmp.eq.s32.totalorder %s23, 1
      %p139 = por %p137, %p138
      %p140 = scmp.ne.s32.totalorder %s131, %s132
      %p141 = scmp.eq.s32.totalorder %s23, 0
      %p142 = por %p140, %p141
      %p143 = scmp.ne.s32.totalorder %s131, %s132
      %p144 = scmp.eq.s32.totalorder %s24, 1
      %p145 = por %p143, %p144
      %p147 = scmp.ne.s32.totalorder %s132, %s146
      %p148 = scmp.eq.s32.totalorder %s24, 0
      %p149 = por %p147, %p148
      %s150 = ssub.s32 %s25, %s37
      %s151 = ssub.s32 %s26, %s33
      %s152 = sor.u32 %s150, %s151
      %p153 = scmp.eq.s32.totalorder %s152, 0
      %s155 = sadd.s32 %s154, 1
      %s156 = scalar_select %p153, %s154, %s155
      %p159 = pneg %p153
      %p160 = scmp.eq.s32.totalorder %s18, 1
      %p161 = por %p159, %p160
      %p162 = scmp.ne.s32.totalorder %s154, %s157
      %p163 = scmp.eq.s32.totalorder %s18, 0
      %p164 = por %p162, %p163
      %p165 = scmp.ne.s32.totalorder %s154, %s157
      %p166 = scmp.eq.s32.totalorder %s23, 1
      %p167 = por %p165, %p166
      %p168 = scmp.ne.s32.totalorder %s157, %s158
      %p169 = scmp.eq.s32.totalorder %s23, 0
      %p170 = por %p168, %p169
      %p171 = scmp.ne.s32.totalorder %s157, %s158
      %p172 = scmp.eq.s32.totalorder %s24, 1
      %p173 = por %p171, %p172
      %p175 = scmp.ne.s32.totalorder %s158, %s174
      %p176 = scmp.eq.s32.totalorder %s24, 0
      %p177 = por %p175, %p176
      %p178 = scmp.le.s32.totalorder 1, %s18
      %p179 = scmp.lt.s32.totalorder %s18, 3
      %p180 = pnand %p178, %p179
      %p181 = pneg %p180
      // Predicated region
      $region9: #{tpu_custom_call.1} parent=5 // pred_check
        _
      $region10: #{tpu_custom_call.1} parent=5 // pred_check_branch
        %183 = sbr.rel (%p180) target = $region12
      $region11: #{tpu_custom_call.1} parent=5 // pred_region
        %s184 = ssub.s32 %s18, 1
        // Predicated region
        $region13: #{tpu_custom_call.1} parent=11 // pred_check
          %p185 = pneg %p79
        $region14: #{tpu_custom_call.1} parent=11 // pred_check_branch
          %187 = sbr.rel (%p185) target = $region16
        $region15: #{tpu_custom_call.1} parent=11 // pred_region
          _
        $region16: #{tpu_custom_call.1} parent=11 // pred_fallthru
          _
        // Predicated region
        $region17: #{tpu_custom_call.1} parent=11 // pred_check
          %p188 = pneg %p100
        $region18: #{tpu_custom_call.1} parent=11 // pred_check_branch
          %190 = sbr.rel (%p188) target = $region20
        $region19: #{tpu_custom_call.1} parent=11 // pred_region
          _
        $region20: #{tpu_custom_call.1} parent=11 // pred_fallthru
          _
        // Predicated region
        $region21: #{tpu_custom_call.1} parent=11 // pred_check
          %p191 = pneg %p121
        $region22: #{tpu_custom_call.1} parent=11 // pred_check_branch
          %193 = sbr.rel (%p191) target = $region24
        $region23: #{tpu_custom_call.1} parent=11 // pred_region
          %s195 = ssub.s32 256, 256
          %196 = vsyncadd [#allocation6], %s195
          %s197 = sshll.u32 [#allocation5], 4
          %s198 = int_to_ptr.vmem [resolvable:$true] %s197
          %203 = dma.hbm_to_vmem [thread:$0]  %s3, 256, %s198, [#allocation6], 64, 64, 4
        $region24: #{tpu_custom_call.1} parent=11 // pred_fallthru
          _
        // Predicated region
        $region25: #{tpu_custom_call.1} parent=11 // pred_check
          %p204 = pneg %p142
        $region26: #{tpu_custom_call.1} parent=11 // pred_check_branch
          %206 = sbr.rel (%p204) target = $region28
        $region27: #{tpu_custom_call.1} parent=11 // pred_region
          _
        $region28: #{tpu_custom_call.1} parent=11 // pred_fallthru
          _
      $region12: #{tpu_custom_call.1} parent=5 // pred_fallthru
        _
      %p207 = scmp.lt.s32.totalorder %s18, 2
      // Predicated region
      $region29: #{tpu_custom_call.1} parent=5 // pred_check
        %p208 = pneg %p207
      $region30: #{tpu_custom_call.1} parent=5 // pred_check_branch
        %210 = sbr.rel (%p208) target = $region32
      $region31: #{tpu_custom_call.1} parent=5 // pred_region
        // Predicated region
        $region33: #{tpu_custom_call.1} parent=31 // pred_check
          %p211 = pneg %p52
        $region34: #{tpu_custom_call.1} parent=31 // pred_check_branch
          %213 = sbr.rel (%p211) target = $region36
        $region35: #{tpu_custom_call.1} parent=31 // pred_region
          %s214 = sand.u32 %s42, 1
          %s215 = scalar_lea.sflag [#allocation3], %s214
          %s216 = sand.u32 %s42, 1
          %s217 = smul.addr %s216, 8
          %s218 = scalar_lea.vmem [#allocation2], %s217
          %s220 = ssub.s32 128, 128
          %221 = vsyncadd %s215, %s220
          %s222 = sadd.s32 %s26, %s25
          %s223 = smul.addr %s222, 128
          %s224 = scalar_lea.hbm %s0, %s223
          %s226 = sshll.u32 %s218, 4
          %s227 = int_to_ptr.vmem [resolvable:$true] %s226
          %229 = dma.hbm_to_vmem [thread:$0]  %s224, 128, %s227, %s215
        $region36: #{tpu_custom_call.1} parent=31 // pred_fallthru
          _
      $region32: #{tpu_custom_call.1} parent=5 // pred_fallthru
        _
      %p230 = scmp.le.s32.totalorder 1, %s18
      %p231 = scmp.lt.s32.totalorder %s18, 3
      %p232 = pnand %p230, %p231
      %p233 = pneg %p232
      // Predicated region
      $region37: #{tpu_custom_call.1} parent=5 // pred_check
        _
      $region38: #{tpu_custom_call.1} parent=5 // pred_check_branch
        %235 = sbr.rel (%p232) target = $region40
      $region39: #{tpu_custom_call.1} parent=5 // pred_region
        %s236 = ssub.s32 %s18, 1
        %s237 = sand.u32 %s45, 1
        %s238 = scalar_lea.sflag [#allocation3], %s237
        %s239 = sand.u32 %s45, 1
        %s240 = smul.addr %s239, 8
        %s241 = scalar_lea.vmem [#allocation2], %s240
        // Predicated region
        $region41: #{tpu_custom_call.1} parent=39 // pred_check
          %p242 = pneg %p58
        $region42: #{tpu_custom_call.1} parent=39 // pred_check_branch
          %244 = sbr.rel (%p242) target = $region44
        $region43: #{tpu_custom_call.1} parent=39 // pred_region
          %245 = dma.done %s238, 128
        $region44: #{tpu_custom_call.1} parent=39 // pred_fallthru
          _
        // Predicated region
        $region45: #{tpu_custom_call.1} parent=39 // pred_check
          %p246 = pneg %p121
        $region46: #{tpu_custom_call.1} parent=39 // pred_check_branch
          %248 = sbr.rel (%p246) target = $region48
        $region47: #{tpu_custom_call.1} parent=39 // pred_region
          %249 = dma.done [#allocation6], 256
        $region48: #{tpu_custom_call.1} parent=39 // pred_fallthru
          _
        %s250 = sand.u32 %s45, 1
        %s251 = scalar_lea.sflag [#allocation3], %s250
        %s252 = sand.u32 %s45, 1
        %s253 = smul.addr %s252, 8
        %s254 = scalar_lea.vmem [#allocation2], %s253
        %p255 = pneg %p58
        %p256 = pneg %p55
        %p257 = pneg %p79
        %p258 = pneg %p76
        %p259 = pneg %p100
        %p260 = pneg %p97
        %p261 = pneg %p121
        %p262 = pneg %p118
        %p263 = pneg %p142
        %p264 = pneg %p139
        %p265 = pneg %p170
        %p266 = pneg %p167
        %s267 = sand.u32 %s157, 1
        %s268 = scalar_lea.sflag [#allocation4], %s267
        %s269 = sand.u32 %s157, 1
        %s270 = smul.addr %s269, 4
        %s271 = scalar_lea.vmem [#allocation7], %s270
        %v273 = vld [vmem:[%s241] sm:$0xff]
        %v274 = vld [vmem:[%s1] sm:$0x1]
        %v275 = vld [vmem:[%s2] sm:$0x1]
        %vm276 = vcmask 261120
        %v277 = vsel %vm276, %v273, 0.0
        %278 = vadd.xlane.f32.xlu0 %v277
        %v279 = vpop.xlane.xlu0 %278
        %v280 = vrcp.pop 32.0
        %v281 = vmul.f32 %v279, %v280
        %v282 = vsub.f32 %v273, %v281
        %v283 = vmul.f32 %v282, %v282
        %v284 = vsel %vm276, %v283, 0.0
        %285 = vadd.xlane.f32.xlu0 %v284
        %v286 = vpop.xlane.xlu0 %285
        %v287 = vmul.f32 %v286, %v280
        %v288 = vadd.f32 %v287, 1e-05
        %v289 = vrsqrt.pop %v288
        %v290 = vmul.f32 %v282, %v289
        %v292 = vlaneseq
        %v293 = vshrl.u32 %v292, 7
        %v294 = vsub.s32 0, %v293
        %v295 = vrot.slane %v274, %v294
        %v297 = vmul.f32 %v290, %v295
        %v299 = vlaneseq
        %v300 = vshrl.u32 %v299, 7
        %v301 = vsub.s32 0, %v300
        %v302 = vrot.slane %v275, %v301
        %v304 = vadd.f32 %v297, %v302
        %v305 = vpack.c.bf16 %v304, %v304
        %v306 = vld [vmem:[#allocation5] sm:$0xf]
        %v307 = vld [vmem:[#allocation5 + $0x4] sm:$0xf]
        %v308 = vld [vmem:[#allocation5 + $0x8] sm:$0xf]
        %v309 = vld [vmem:[#allocation5 + $0xc] sm:$0xf]
        %v310 = vld [vmem:[%s4] sm:$0x1]
        %v312 = vlaneseq
        %v313 = vshrl.u32 %v312, 7
        %v314 = vsub.s32 0, %v313
        %v315 = vrot.slane %v310, %v314
        %v321 = vunpack.c.l.b16 %v306
        %v322 = vunpack.c.l.b16 %v307
        %v323 = vunpack.c.l.b16 %v308
        %v324 = vunpack.c.l.b16 %v309
        %v325 = vpack.c.b16 %v322, %v321
        %v326 = vpack.c.b16 %v324, %v323
        %v330 = vsel %vm276, %v305, 0
        %332 = vmatprep.subr.bf16.mxu0 0
        %333 = vmatpush1.bf16.msra.mxu0 0
        %334 = vmatprep.subr.bf16.mxu0 0
        %335 = vmatpush1.bf16.msra.mxu0 0
        %336 = vmatprep.subr.bf16.mxu0 0
        %337 = vmatpush1.bf16.msra.mxu0 0
        %338 = vmatprep.subr.bf16.mxu0 0
        %339 = vmatpush1.bf16.msra.mxu0 0
        %340 = vmatprep.subr.bf16.mxu0 0
        %341 = vmatpush1.bf16.msra.mxu0 0
        %342 = vmatprep.subr.bf16.mxu0 0
        %343 = vmatpush1.bf16.msra.mxu0 0
        %344 = vmatprep.subr.bf16.mxu0 0
        %345 = vmatpush1.bf16.msra.mxu0 %v326
        %346 = vmatprep.subr.bf16.mxu0 0
        %347 = vmatpush1.bf16.msra.mxu0 %v325
        %348 = vmatprep.subr.bf16.mxu0 0
        %349 = vmatpush2.bf16.msra.mxu0 0
        %350 = vmatprep.subr.bf16.mxu0 0
        %351 = vmatpush2.bf16.msra.mxu0 0
        %352 = vmatprep.subr.bf16.mxu0 0
        %353 = vmatpush2.bf16.msra.mxu0 0
        %354 = vmatprep.subr.bf16.mxu0 0
        %355 = vmatpush2.bf16.msra.mxu0 0
        %356 = vmatprep.subr.bf16.mxu0 0
        %357 = vmatpush2.bf16.msra.mxu0 0
        %358 = vmatprep.subr.bf16.mxu0 0
        %359 = vmatpush2.bf16.msra.mxu0 0
        %360 = vmatprep.subr.bf16.mxu0 0
        %361 = vmatpush2.bf16.msra.mxu0 0
        %362 = vmatprep.subr.bf16.mxu0 0
        %363 = vmatpush2.bf16.msra.mxu0 0
        %364 = vmatprep.mubr.bf16.mxu0 0
        %365 = vmatmul.mubr.bf16.gmra.mxu0 %v330
        %v366 = vpop.f32.mrf.mxu0
        %v367 = vadd.f32 %v315, %v366
        %v368 = vpop.f32.mrf.mxu0
        %v369 = vpop.f32.mrf.mxu0
        %v370 = vpop.f32.mrf.mxu0
        %371 = vdwg.mxu0
        %v372 = vpack.c.bf16 %v367, %v367
        %vm373 = vcmask 781312
        %374 = vst.msk [vmem:[%s271] sm:$0xf] %vm373, %v372
        %s375 = sand.u32 %s157, 1
        %s376 = scalar_lea.sflag [#allocation4], %s375
        %s377 = sand.u32 %s157, 1
        %s378 = smul.addr %s377, 4
        %s379 = scalar_lea.vmem [#allocation7], %s378
        // Predicated region
        $region49: #{tpu_custom_call.1} parent=39 // pred_check
          %p380 = pneg %p167
        $region50: #{tpu_custom_call.1} parent=39 // pred_check_branch
          %382 = sbr.rel (%p380) target = $region52
        $region51: #{tpu_custom_call.1} parent=39 // pred_region
          %s384 = ssub.s32 64, 64
          %385 = vsyncadd %s376, %s384
          %s386 = sadd.s32 %s28, %s27
          %s387 = smul.addr %s386, 64
          %s388 = scalar_lea.hbm %s5, %s387
          %s390 = sshll.u32 %s379, 4
          %s391 = int_to_ptr.vmem [resolvable:$true] %s390
          %393 = dma.vmem_to_hbm [thread:$0]  %s391, 64, %s388, %s376
        $region52: #{tpu_custom_call.1} parent=39 // pred_fallthru
          _
      $region40: #{tpu_custom_call.1} parent=5 // pred_fallthru
        _
      %p394 = scmp.le.s32.totalorder 2, %s18
      // Predicated region
      $region53: #{tpu_custom_call.1} parent=5 // pred_check
        %p395 = pneg %p394
      $region54: #{tpu_custom_call.1} parent=5 // pred_check_branch
        %397 = sbr.rel (%p395) target = $region56
      $region55: #{tpu_custom_call.1} parent=5 // pred_region
        %s398 = ssub.s32 %s18, 2
        // Predicated region
        $region57: #{tpu_custom_call.1} parent=55 // pred_check
          %p399 = pneg %p173
        $region58: #{tpu_custom_call.1} parent=55 // pred_check_branch
          %401 = sbr.rel (%p399) target = $region60
        $region59: #{tpu_custom_call.1} parent=55 // pred_region
          %s402 = sand.u32 %s158, 1
          %s403 = scalar_lea.sflag [#allocation4], %s402
          %s404 = sand.u32 %s158, 1
          %s405 = smul.addr %s404, 4
          %s406 = scalar_lea.vmem [#allocation7], %s405
          %407 = dma.done %s403, 64
        $region60: #{tpu_custom_call.1} parent=55 // pred_fallthru
          _
      $region56: #{tpu_custom_call.1} parent=5 // pred_fallthru
        _
    $region6: #{tpu_custom_call.1} parent=1 // loop_footer
      %s22 = sadd.s32 1, %s18
    $region7: #{tpu_custom_call.1} parent=1 // loop_footer_branch
      %17 = sbr.rel target = $region3
    $region8: #{tpu_custom_call.1} parent=1 // loop_exit
      _
    %408 = vsyncpa [#allocation3], 1
    %s409 = scalar_lea.sflag [#allocation3], 1
    %410 = vsyncpa %s409, 1
    %411 = vsyncpa [#allocation6], 1
    %412 = vsyncpa [#allocation4], 1
    %s413 = scalar_lea.sflag [#allocation4], 1
    %414 = vsyncpa %s413, 1

</llo_original>
